<compile_context>
chip_gen: v5e
topology: v5e:2x2
jax: 0.10.0
libtpu: 0.0.40
codegen_flags: <defaults>
</compile_context>

<pallas_src>
import functools

import numpy as np
import jax
import jax.numpy as jnp
from jax import lax
from jax.experimental import pallas as pl
from jax.experimental.pallas import tpu as pltpu

LANE = 128
EPS = 1e-5  # nn.LayerNorm default eps


def _round_up(n, m):
    return ((n + m - 1) // m) * m


def _pad2d(a, rows, cols):
    r, c = a.shape
    return jnp.pad(a, ((0, rows - r), (0, cols - c)))


# ----------------------------- Pallas kernel -------------------------------

def _layernorm_padzero(h, gamma, beta, n_valid):
    """LayerNorm over the last axis with `n_valid` real columns.

    Relies on two invariants enforced by the wrapper:
      * padded columns of `h` are exactly zero (zero-padded weights & biases),
        so they contribute nothing to sum(h) or sum(h*h);
      * gamma/beta are zero-padded, so padded columns come out of the affine
        as exactly zero again (and stay zero through relu and the zero-padded
        rows of the next weight matrix).
    """
    inv_n = jnp.float32(1.0 / n_valid)
    mean = jnp.sum(h, axis=-1, keepdims=True) * inv_n
    var = jnp.sum(h * h, axis=-1, keepdims=True) * inv_n - mean * mean
    return (h - mean) * lax.rsqrt(var + EPS) * gamma + beta


def _actor_bn_kernel(x_ref, w1_ref, v1_ref, w2_ref, v2_ref, w3_ref, b3_ref,
                     out_ref, *, h0_valid, h1_valid):
    x = x_ref[...]                                                     # [TB, SP]

    # Hoist the packed per-layer vectors once per grid step.
    v1 = v1_ref[...]                                                   # [3, HP0]
    v2 = v2_ref[...]                                                   # [3, HP1]
    b1, g1, be1 = v1[0:1, :], v1[1:2, :], v1[2:3, :]
    b2, g2, be2 = v2[0:1, :], v2[1:2, :], v2[2:3, :]
    b3 = b3_ref[...]                                                   # [1, AP]

    h = jnp.dot(x, w1_ref[...], preferred_element_type=jnp.float32) + b1
    h = _layernorm_padzero(h, g1, be1, h0_valid)
    h = jnp.maximum(h, 0.0)                                            # relu

    h = jnp.dot(h, w2_ref[...], preferred_element_type=jnp.float32) + b2
    h = _layernorm_padzero(h, g2, be2, h1_valid)
    h = jnp.maximum(h, 0.0)                                            # relu

    a = jnp.dot(h, w3_ref[...], preferred_element_type=jnp.float32) + b3
    out_ref[...] = jnp.tanh(a)                                         # lane-dense store


# ------------------------------- wrapper ------------------------------------

def _batch_tile(B):
    """Rows per grid step (multiple of 8) and padded batch size."""
    if B >= 256:
        # >=2 grid steps, kept even so the "parallel" axis splits across
        # v7x's two TensorCores; tiles capped at 512 rows.
        n_steps = max(2, -(-B // 512))
        if n_steps % 2:
            n_steps += 1
        TB = _round_up(-(-B // n_steps), 8)
    else:
        # Small batch: one grid step, overhead dominated anyway.
        TB = _round_up(max(B, 8), 8)
    Bp = _round_up(B, TB)
    return TB, Bp


def _vmem_limit_bytes(TB, SP, HP0, HP1, AP):
    """Explicit VMEM budget: 2 buffers per pipelined tile + intermediates,
    with headroom, clamped to fit v7x's 64 MiB physical VMEM."""
    f32 = 4
    weights = SP * HP0 + 8 * HP0 + HP0 * HP1 + 8 * HP1 + HP1 * AP + 8 * AP
    acts = TB * (SP + AP)
    inter = 6 * TB * max(HP0, HP1)          # Mosaic temporaries for [TB, HP] values
    need = f32 * (2 * acts + 2 * weights + inter) + (4 << 20)
    return int(min(max(need, 32 << 20), 64 << 20))


def make_actor_bn_forward(params):
    """Pads & packs the parameters ONCE and returns a jitted `state -> actions`
    callable.  `params` holds unpadded weights transposed to [in, out]:
      w1[S,H0] b1[1,H0] g1[1,H0] beta1[1,H0]
      w2[H0,H1] b2[1,H1] g2[1,H1] beta2[1,H1]
      w3[H1,A] b3[1,A]
    """
    w1, b1, g1, be1 = params["w1"], params["b1"], params["g1"], params["beta1"]
    w2, b2, g2, be2 = params["w2"], params["b2"], params["g2"], params["beta2"]
    w3, b3 = params["w3"], params["b3"]

    S, H0 = w1.shape
    H1, A = w2.shape[1], w3.shape[1]
    SP, HP0, HP1, AP = (_round_up(d, LANE) for d in (S, H0, H1, A))

    # Pad once (zeros).  gamma/beta padding MUST be zero (see _layernorm_padzero).
    w1p = _pad2d(w1, SP, HP0)
    w2p = _pad2d(w2, HP0, HP1)
    w3p = _pad2d(w3, HP1, AP)
    v1p = _pad2d(jnp.concatenate([b1, g1, be1], axis=0), 3, HP0)   # [3, HP0]
    v2p = _pad2d(jnp.concatenate([b2, g2, be2], axis=0), 3, HP1)   # [3, HP1]
    b3p = _pad2d(b3, 1, AP)
    padded = (w1p, v1p, w2p, v2p, w3p, b3p)

    kernel = functools.partial(_actor_bn_kernel, h0_valid=H0, h1_valid=H1)

    @jax.jit
    def _fwd(state, padded_params):
        w1p, v1p, w2p, v2p, w3p, b3p = padded_params
        B = state.shape[0]
        TB, Bp = _batch_tile(B)
        xp = _pad2d(state.astype(jnp.float32), Bp, SP)

        full = lambda arr: pl.BlockSpec(arr.shape, lambda i: (0, 0))  # resident block
        out = pl.pallas_call(
            kernel,
            out_shape=jax.ShapeDtypeStruct((Bp, AP), jnp.float32),
            grid=(Bp // TB,),
            in_specs=[
                pl.BlockSpec((TB, SP), lambda i: (i, 0)),   # state tile (batch-gridded)
                full(w1p), full(v1p),
                full(w2p), full(v2p),
                full(w3p), full(b3p),
            ],
            out_specs=pl.BlockSpec((TB, AP), lambda i: (i, 0)),
            compiler_params=pltpu.CompilerParams(
                dimension_semantics=("parallel",),
                vmem_limit_bytes=_vmem_limit_bytes(TB, SP, HP0, HP1, AP)),
        )(xp, w1p, v1p, w2p, v2p, w3p, b3p)
        return out[:B, :A]

    return lambda state: _fwd(state, padded)


# ------------------------- deterministic parameter init --------------------

def init_actor_params(key, state_size, hidden_layers, action_size,
                      last_layer_init=3e-3):
    """Mirrors Actor_network_BN.initialize_parameters(): uniform(-s, s) with
    s = 1/sqrt(weight.size(0)) (PyTorch: out_features) for fc1/fc2 and
    s = last_layer_init for the output layer.  LayerNorm gamma/beta keep their
    PyTorch defaults (1, 0).  Weights are stored transposed to [in, out]."""
    h0, h1 = hidden_layers
    k = jax.random.split(key, 6)
    s1, s2, s3 = 1.0 / np.sqrt(h0), 1.0 / np.sqrt(h1), last_layer_init
    u = lambda kk, shape, s: jax.random.uniform(kk, shape, jnp.float32, -s, s)
    return {
        "w1": u(k[0], (state_size, h0), s1), "b1": u(k[1], (1, h0), s1),
        "g1": jnp.ones((1, h0), jnp.float32), "beta1": jnp.zeros((1, h0), jnp.float32),
        "w2": u(k[2], (h0, h1), s2), "b2": u(k[3], (1, h1), s2),
        "g2": jnp.ones((1, h1), jnp.float32), "beta2": jnp.zeros((1, h1), jnp.float32),
        "w3": u(k[4], (h1, action_size), s3), "b3": u(k[5], (1, action_size), s3),
    }


def actor_bn_forward_ref(state, p):
    """Pure-JAX reference (exact LayerNorm semantics) for verification."""
    def ln(x, g, b):
        mean = jnp.mean(x, axis=-1, keepdims=True)
        var = jnp.mean((x - mean) ** 2, axis=-1, keepdims=True)
        return (x - mean) / jnp.sqrt(var + EPS) * g + b
    h1 = jax.nn.relu(ln(state @ p["w1"] + p["b1"], p["g1"], p["beta1"]))
    h2 = jax.nn.relu(ln(h1 @ p["w2"] + p["b2"], p["g2"], p["beta2"]))
    return jnp.tanh(h2 @ p["w3"] + p["b3"])


# ----------------------------------- main -----------------------------------

if __name__ == "__main__":
    key = jax.random.PRNGKey(0)
    k_param, k_s1, k_s2 = jax.random.split(key, 3)

    # Deliberately non-lane-aligned small sizes to exercise padding + LN.
    state_size = 33
    hidden_layers = (48, 64)
    action_size = 4

    params = init_actor_params(k_param, state_size, hidden_layers, action_size)
    forward = make_actor_bn_forward(params)   # pads/packs weights once, jitted

    # Case 1: tiny inference-style batch (single grid step).
    state_small = jax.random.normal(k_s1, (5, state_size), dtype=jnp.float32)
    out_small = jax.block_until_ready(forward(state_small))
    np.testing.assert_allclose(np.asarray(out_small),
                               np.asarray(actor_bn_forward_ref(state_small, params)),
                               rtol=1e-4, atol=1e-5)

    # Case 2: replay-style batch (multi-step even grid -> v7x 2-TC split path).
    state_big = jax.random.normal(k_s2, (300, state_size), dtype=jnp.float32)
    out_big = jax.block_until_ready(forward(state_big))
    np.testing.assert_allclose(np.asarray(out_big),
                               np.asarray(actor_bn_forward_ref(state_big, params)),
                               rtol=1e-4, atol=1e-5)

    print("KERNEL_OK")
</pallas_src>

<mosaic_0001>
module attributes {stable_mosaic.version = 11 : i64} {
  func.func @_actor_bn_kernel(%arg0: i32, %arg1: memref<8x128xf32, #tpu.memory_space<vmem>>, %arg2: memref<128x128xf32, #tpu.memory_space<vmem>>, %arg3: memref<3x128xf32, #tpu.memory_space<vmem>>, %arg4: memref<128x128xf32, #tpu.memory_space<vmem>>, %arg5: memref<3x128xf32, #tpu.memory_space<vmem>>, %arg6: memref<128x128xf32, #tpu.memory_space<vmem>>, %arg7: memref<1x128xf32, #tpu.memory_space<vmem>>, %arg8: memref<8x128xf32, #tpu.memory_space<vmem>>) attributes {dimension_semantics = [#tpu.dimension_semantics<parallel>], iteration_bounds = array<i64: 1>, scalar_prefetch = 0 : i64, scratch_operands = 0 : i64, tpu.core_type = #tpu.core_type<tc>, window_params = [{transform_indices = @transform_0, window_bounds = array<i64: 8, 128>}, {pipeline_mode = #tpu.pipeline_mode<synchronous>, transform_indices = @transform_1, window_bounds = array<i64: 128, 128>}, {pipeline_mode = #tpu.pipeline_mode<synchronous>, transform_indices = @transform_2, window_bounds = array<i64: 3, 128>}, {pipeline_mode = #tpu.pipeline_mode<synchronous>, transform_indices = @transform_3, window_bounds = array<i64: 128, 128>}, {pipeline_mode = #tpu.pipeline_mode<synchronous>, transform_indices = @transform_4, window_bounds = array<i64: 3, 128>}, {pipeline_mode = #tpu.pipeline_mode<synchronous>, transform_indices = @transform_5, window_bounds = array<i64: 128, 128>}, {pipeline_mode = #tpu.pipeline_mode<synchronous>, transform_indices = @transform_6, window_bounds = array<i64: 1, 128>}, {transform_indices = @transform_7, window_bounds = array<i64: 8, 128>}]} {
    %c0 = arith.constant 0 : index
    %c0_0 = arith.constant 0 : index
    %0 = vector.load %arg1[%c0, %c0_0] : memref<8x128xf32, #tpu.memory_space<vmem>>, vector<8x128xf32>
    %c0_1 = arith.constant 0 : index
    %c0_2 = arith.constant 0 : index
    %1 = vector.load %arg3[%c0_1, %c0_2] : memref<3x128xf32, #tpu.memory_space<vmem>>, vector<3x128xf32>
    %c0_3 = arith.constant 0 : index
    %c0_4 = arith.constant 0 : index
    %2 = vector.load %arg5[%c0_3, %c0_4] : memref<3x128xf32, #tpu.memory_space<vmem>>, vector<3x128xf32>
    %3 = vector.extract_strided_slice %1 {offsets = [0, 0], sizes = [1, 128], strides = [1, 1]} : vector<3x128xf32> to vector<1x128xf32>
    %4 = vector.extract_strided_slice %1 {offsets = [1, 0], sizes = [1, 128], strides = [1, 1]} : vector<3x128xf32> to vector<1x128xf32>
    %5 = vector.extract_strided_slice %1 {offsets = [2, 0], sizes = [1, 128], strides = [1, 1]} : vector<3x128xf32> to vector<1x128xf32>
    %6 = vector.extract_strided_slice %2 {offsets = [0, 0], sizes = [1, 128], strides = [1, 1]} : vector<3x128xf32> to vector<1x128xf32>
    %7 = vector.extract_strided_slice %2 {offsets = [1, 0], sizes = [1, 128], strides = [1, 1]} : vector<3x128xf32> to vector<1x128xf32>
    %8 = vector.extract_strided_slice %2 {offsets = [2, 0], sizes = [1, 128], strides = [1, 1]} : vector<3x128xf32> to vector<1x128xf32>
    %c0_5 = arith.constant 0 : index
    %c0_6 = arith.constant 0 : index
    %9 = vector.load %arg7[%c0_5, %c0_6] : memref<1x128xf32, #tpu.memory_space<vmem>>, vector<1x128xf32>
    %c0_7 = arith.constant 0 : index
    %c0_8 = arith.constant 0 : index
    %10 = vector.load %arg2[%c0_7, %c0_8] : memref<128x128xf32, #tpu.memory_space<vmem>>, vector<128x128xf32>
    %cst = arith.constant dense<0.000000e+00> : vector<8x128xf32>
    %11 = tpu.matmul %0, %10, %cst {dimension_numbers = #tpu.dot_dimension_numbers<[1], [0], [0], [1], [0, 0, 1, 1], [], []>} : vector<8x128xf32>, vector<128x128xf32>, vector<8x128xf32> -> vector<8x128xf32>
    %12 = vector.broadcast %3 : vector<1x128xf32> to vector<8x128xf32>
    %13 = arith.addf %11, %12 : vector<8x128xf32>
    %cst_9 = arith.constant dense<0.000000e+00> : vector<8xf32>
    %14 = vector.multi_reduction <add>, %13, %cst_9 [1] : vector<8x128xf32> to vector<8xf32>
    %15 = vector.shape_cast %14 : vector<8xf32> to vector<8x1xf32>
    %cst_10 = arith.constant 0.020833334 : f32
    %16 = vector.broadcast %cst_10 : f32 to vector<8x1xf32>
    %17 = arith.mulf %15, %16 : vector<8x1xf32>
    %18 = arith.mulf %13, %13 : vector<8x128xf32>
    %cst_11 = arith.constant dense<0.000000e+00> : vector<8xf32>
    %19 = vector.multi_reduction <add>, %18, %cst_11 [1] : vector<8x128xf32> to vector<8xf32>
    %20 = vector.shape_cast %19 : vector<8xf32> to vector<8x1xf32>
    %cst_12 = arith.constant 0.020833334 : f32
    %21 = vector.broadcast %cst_12 : f32 to vector<8x1xf32>
    %22 = arith.mulf %20, %21 : vector<8x1xf32>
    %23 = arith.mulf %17, %17 : vector<8x1xf32>
    %24 = arith.subf %22, %23 : vector<8x1xf32>
    %25 = vector.broadcast %17 : vector<8x1xf32> to vector<8x128xf32>
    %26 = arith.subf %13, %25 : vector<8x128xf32>
    %cst_13 = arith.constant 9.99999974E-6 : f32
    %27 = vector.broadcast %cst_13 : f32 to vector<8x1xf32>
    %28 = arith.addf %24, %27 : vector<8x1xf32>
    %29 = math.rsqrt %28 : vector<8x1xf32>
    %30 = vector.broadcast %29 : vector<8x1xf32> to vector<8x128xf32>
    %31 = arith.mulf %26, %30 : vector<8x128xf32>
    %32 = vector.broadcast %4 : vector<1x128xf32> to vector<8x128xf32>
    %33 = arith.mulf %31, %32 : vector<8x128xf32>
    %34 = vector.broadcast %5 : vector<1x128xf32> to vector<8x128xf32>
    %35 = arith.addf %33, %34 : vector<8x128xf32>
    %cst_14 = arith.constant 0.000000e+00 : f32
    %36 = vector.broadcast %cst_14 : f32 to vector<8x128xf32>
    %37 = arith.maximumf %35, %36 : vector<8x128xf32>
    %c0_15 = arith.constant 0 : index
    %c0_16 = arith.constant 0 : index
    %38 = vector.load %arg4[%c0_15, %c0_16] : memref<128x128xf32, #tpu.memory_space<vmem>>, vector<128x128xf32>
    %cst_17 = arith.constant dense<0.000000e+00> : vector<8x128xf32>
    %39 = tpu.matmul %37, %38, %cst_17 {dimension_numbers = #tpu.dot_dimension_numbers<[1], [0], [0], [1], [0, 0, 1, 1], [], []>} : vector<8x128xf32>, vector<128x128xf32>, vector<8x128xf32> -> vector<8x128xf32>
    %40 = vector.broadcast %6 : vector<1x128xf32> to vector<8x128xf32>
    %41 = arith.addf %39, %40 : vector<8x128xf32>
    %cst_18 = arith.constant dense<0.000000e+00> : vector<8xf32>
    %42 = vector.multi_reduction <add>, %41, %cst_18 [1] : vector<8x128xf32> to vector<8xf32>
    %43 = vector.shape_cast %42 : vector<8xf32> to vector<8x1xf32>
    %cst_19 = arith.constant 1.562500e-02 : f32
    %44 = vector.broadcast %cst_19 : f32 to vector<8x1xf32>
    %45 = arith.mulf %43, %44 : vector<8x1xf32>
    %46 = arith.mulf %41, %41 : vector<8x128xf32>
    %cst_20 = arith.constant dense<0.000000e+00> : vector<8xf32>
    %47 = vector.multi_reduction <add>, %46, %cst_20 [1] : vector<8x128xf32> to vector<8xf32>
    %48 = vector.shape_cast %47 : vector<8xf32> to vector<8x1xf32>
    %cst_21 = arith.constant 1.562500e-02 : f32
    %49 = vector.broadcast %cst_21 : f32 to vector<8x1xf32>
    %50 = arith.mulf %48, %49 : vector<8x1xf32>
    %51 = arith.mulf %45, %45 : vector<8x1xf32>
    %52 = arith.subf %50, %51 : vector<8x1xf32>
    %53 = vector.broadcast %45 : vector<8x1xf32> to vector<8x128xf32>
    %54 = arith.subf %41, %53 : vector<8x128xf32>
    %cst_22 = arith.constant 9.99999974E-6 : f32
    %55 = vector.broadcast %cst_22 : f32 to vector<8x1xf32>
    %56 = arith.addf %52, %55 : vector<8x1xf32>
    %57 = math.rsqrt %56 : vector<8x1xf32>
    %58 = vector.broadcast %57 : vector<8x1xf32> to vector<8x128xf32>
    %59 = arith.mulf %54, %58 : vector<8x128xf32>
    %60 = vector.broadcast %7 : vector<1x128xf32> to vector<8x128xf32>
    %61 = arith.mulf %59, %60 : vector<8x128xf32>
    %62 = vector.broadcast %8 : vector<1x128xf32> to vector<8x128xf32>
    %63 = arith.addf %61, %62 : vector<8x128xf32>
    %cst_23 = arith.constant 0.000000e+00 : f32
    %64 = vector.broadcast %cst_23 : f32 to vector<8x128xf32>
    %65 = arith.maximumf %63, %64 : vector<8x128xf32>
    %c0_24 = arith.constant 0 : index
    %c0_25 = arith.constant 0 : index
    %66 = vector.load %arg6[%c0_24, %c0_25] : memref<128x128xf32, #tpu.memory_space<vmem>>, vector<128x128xf32>
    %cst_26 = arith.constant dense<0.000000e+00> : vector<8x128xf32>
    %67 = tpu.matmul %65, %66, %cst_26 {dimension_numbers = #tpu.dot_dimension_numbers<[1], [0], [0], [1], [0, 0, 1, 1], [], []>} : vector<8x128xf32>, vector<128x128xf32>, vector<8x128xf32> -> vector<8x128xf32>
    %68 = vector.broadcast %9 : vector<1x128xf32> to vector<8x128xf32>
    %69 = arith.addf %67, %68 : vector<8x128xf32>
    %70 = math.tanh %69 : vector<8x128xf32>
    %c0_27 = arith.constant 0 : index
    %c0_28 = arith.constant 0 : index
    %71 = vector.load %arg8[%c0_27, %c0_28] : memref<8x128xf32, #tpu.memory_space<vmem>>, vector<8x128xf32>
    tpu.vector_store %arg8[%c0_27, %c0_28], %70 {strides = array<i32>} : memref<8x128xf32, #tpu.memory_space<vmem>>, vector<8x128xf32>,
    return
  }
  func.func @transform_0(%arg0: i32) -> (i32, i32) {
    %c0_i32 = arith.constant 0 : i32
    %c0_i32_0 = arith.constant 0 : i32
    return %arg0, %c0_i32 : i32, i32
  }
  func.func @transform_1(%arg0: i32) -> (i32, i32) {
    %c0_i32 = arith.constant 0 : i32
    %c0_i32_0 = arith.constant 0 : i32
    %c0_i32_1 = arith.constant 0 : i32
    return %c0_i32, %c0_i32_0 : i32, i32
  }
  func.func @transform_2(%arg0: i32) -> (i32, i32) {
    %c0_i32 = arith.constant 0 : i32
    %c0_i32_0 = arith.constant 0 : i32
    %c0_i32_1 = arith.constant 0 : i32
    return %c0_i32, %c0_i32_0 : i32, i32
  }
  func.func @transform_3(%arg0: i32) -> (i32, i32) {
    %c0_i32 = arith.constant 0 : i32
    %c0_i32_0 = arith.constant 0 : i32
    %c0_i32_1 = arith.constant 0 : i32
    return %c0_i32, %c0_i32_0 : i32, i32
  }
  func.func @transform_4(%arg0: i32) -> (i32, i32) {
    %c0_i32 = arith.constant 0 : i32
    %c0_i32_0 = arith.constant 0 : i32
    %c0_i32_1 = arith.constant 0 : i32
    return %c0_i32, %c0_i32_0 : i32, i32
  }
  func.func @transform_5(%arg0: i32) -> (i32, i32) {
    %c0_i32 = arith.constant 0 : i32
    %c0_i32_0 = arith.constant 0 : i32
    %c0_i32_1 = arith.constant 0 : i32
    return %c0_i32, %c0_i32_0 : i32, i32
  }
  func.func @transform_6(%arg0: i32) -> (i32, i32) {
    %c0_i32 = arith.constant 0 : i32
    %c0_i32_0 = arith.constant 0 : i32
    %c0_i32_1 = arith.constant 0 : i32
    return %c0_i32, %c0_i32_0 : i32, i32
  }
  func.func @transform_7(%arg0: i32) -> (i32, i32) {
    %c0_i32 = arith.constant 0 : i32
    %c0_i32_0 = arith.constant 0 : i32
    return %arg0, %c0_i32 : i32, i32
  }
}

</mosaic_0001>

<llo_original>
// kernel: _fwd.1
$region0: #{_fwd.1}
  #allocation0 [shape = 'u32[]', space=smem, size = 0x4, offset = 0x4, fixed_abs, tag = 'smem constant byte address 0x4 - core index']
  #allocation1 [shape = 'u32[72,128]{1,0:T(1,128)}', space=vmem, size = 0x9000, scoped, tag = 'internal scratch']
  %s0 = inlined_call_operand.vmem [shape: f32[8,128], index: 0, kind: input, shape index: {}]
  %s1 = inlined_call_operand.hbm [shape: f32[128,128], index: 1, kind: input, shape index: {}]
  %s2 = inlined_call_operand.vmem [shape: f32[3,128], index: 2, kind: input, shape index: {}]
  %s3 = inlined_call_operand.hbm [shape: f32[128,128], index: 3, kind: input, shape index: {}]
  %s4 = inlined_call_operand.vmem [shape: f32[3,128], index: 4, kind: input, shape index: {}]
  %s5 = inlined_call_operand.hbm [shape: f32[128,128], index: 5, kind: input, shape index: {}]
  %s6 = inlined_call_operand.vmem [shape: f32[1,128], index: 6, kind: input, shape index: {}]
  %s7 = inlined_call_operand.vmem [shape: f32[8,128], index: 7, kind: output, shape index: {}]
  %s8 = sld [smem:[#allocation0]]
  $region50: #{_fwd.1} parent=0
    _
  %s10 = ssub.s32 1, %s8
  %s11 = scalar_select 0, %s10, %s8
  $region1: #{_fwd.1} parent=0
    #allocation2 [shape = 'u8[65536]{0}', space=vmem, size = 0x10000, scoped, tag = 'input window, operand 1, single buffered']
    #allocation3 [shape = 's32[1]{0}', space=sflag, size = 0x4, scoped, tag = 'scoped memory for _fwd.1']
    #allocation4 [shape = 'u8[65536]{0}', space=vmem, size = 0x10000, scoped, tag = 'input window, operand 3, single buffered']
    #allocation5 [shape = 's32[1]{0}', space=sflag, size = 0x4, scoped, tag = 'scoped memory for _fwd.1']
    #allocation6 [shape = 'u8[65536]{0}', space=vmem, size = 0x10000, scoped, tag = 'input window, operand 5, single buffered']
    %12 = vsyncpa [#allocation3], 0
    %13 = vsyncpa [#allocation5], 0
    // Predicated region
    $region2: #{_fwd.1} parent=1 // pred_check
      _
    $region3: #{_fwd.1} parent=1 // pred_check_branch
      %15 = sbr.rel (0) target = $region5
    $region4: #{_fwd.1} parent=1 // pred_region
      _
    $region5: #{_fwd.1} parent=1 // pred_fallthru
      _
    // Predicated region
    $region6: #{_fwd.1} parent=1 // pred_check
      _
    $region7: #{_fwd.1} parent=1 // pred_check_branch
      %17 = sbr.rel (0) target = $region9
    $region8: #{_fwd.1} parent=1 // pred_region
      %19 = vsyncadd [#allocation3], 0
      %s20 = sshll.u32 %s1, 4
      %s21 = int_to_ptr.hbm [resolvable:$true] %s20
      %s22 = sshll.u32 [#allocation2], 4
      %s23 = int_to_ptr.vmem [resolvable:$true] %s22
      %28 = dma.hbm_to_vmem [thread:$0]  %s21, 2048, %s23, [#allocation3], 128, 128, 8
    $region9: #{_fwd.1} parent=1 // pred_fallthru
      _
    // Predicated region
    $region10: #{_fwd.1} parent=1 // pred_check
      _
    $region11: #{_fwd.1} parent=1 // pred_check_branch
      %30 = sbr.rel (0) target = $region13
    $region12: #{_fwd.1} parent=1 // pred_region
      _
    $region13: #{_fwd.1} parent=1 // pred_fallthru
      _
    // Predicated region
    $region14: #{_fwd.1} parent=1 // pred_check
      _
    $region15: #{_fwd.1} parent=1 // pred_check_branch
      %32 = sbr.rel (0) target = $region17
    $region16: #{_fwd.1} parent=1 // pred_region
      %34 = vsyncadd [#allocation5], 0
      %s35 = sshll.u32 %s3, 4
      %s36 = int_to_ptr.hbm [resolvable:$true] %s35
      %s37 = sshll.u32 [#allocation4], 4
      %s38 = int_to_ptr.vmem [resolvable:$true] %s37
      %43 = dma.hbm_to_vmem [thread:$0]  %s36, 2048, %s38, [#allocation5], 128, 128, 8
    $region17: #{_fwd.1} parent=1 // pred_fallthru
      _
    // Predicated region
    $region18: #{_fwd.1} parent=1 // pred_check
      _
    $region19: #{_fwd.1} parent=1 // pred_check_branch
      %45 = sbr.rel (0) target = $region21
    $region20: #{_fwd.1} parent=1 // pred_region
      _
    $region21: #{_fwd.1} parent=1 // pred_fallthru
      _
    // Predicated region
    $region22: #{_fwd.1} parent=1 // pred_check
      _
    $region23: #{_fwd.1} parent=1 // pred_check_branch
      %47 = sbr.rel (0) target = $region25
    $region24: #{_fwd.1} parent=1 // pred_region
      %49 = vsyncadd [#allocation5], 0
      %s50 = sshll.u32 %s5, 4
      %s51 = int_to_ptr.hbm [resolvable:$true] %s50
      %s52 = sshll.u32 [#allocation6], 4
      %s53 = int_to_ptr.vmem [resolvable:$true] %s52
      %58 = dma.hbm_to_vmem [thread:$0]  %s51, 2048, %s53, [#allocation5], 128, 128, 8
    $region25: #{_fwd.1} parent=1 // pred_fallthru
      _
    // Predicated region
    $region26: #{_fwd.1} parent=1 // pred_check
      _
    $region27: #{_fwd.1} parent=1 // pred_check_branch
      %60 = sbr.rel (0) target = $region29
    $region28: #{_fwd.1} parent=1 // pred_region
      _
    $region29: #{_fwd.1} parent=1 // pred_fallthru
      _
    // Predicated region
    $region30: #{_fwd.1} parent=1 // pred_check
      _
    $region31: #{_fwd.1} parent=1 // pred_check_branch
      %62 = sbr.rel (0) target = $region33
    $region32: #{_fwd.1} parent=1 // pred_region
      %64 = dma.done [#allocation3], 2048
    $region33: #{_fwd.1} parent=1 // pred_fallthru
      _
    // Predicated region
    $region34: #{_fwd.1} parent=1 // pred_check
      _
    $region35: #{_fwd.1} parent=1 // pred_check_branch
      %66 = sbr.rel (0) target = $region37
    $region36: #{_fwd.1} parent=1 // pred_region
      %68 = dma.done [#allocation5], 2048
    $region37: #{_fwd.1} parent=1 // pred_fallthru
      _
    // Predicated region
    $region38: #{_fwd.1} parent=1 // pred_check
      _
    $region39: #{_fwd.1} parent=1 // pred_check_branch
      %70 = sbr.rel (0) target = $region41
    $region40: #{_fwd.1} parent=1 // pred_region
      %72 = dma.done [#allocation5], 2048
    $region41: #{_fwd.1} parent=1 // pred_fallthru
      _
    %v73 = vld [vmem:[%s0] sm:$0xff]
    %v74 = vld [vmem:[%s2] sm:$0x7]
    %v75 = vld [vmem:[%s4] sm:$0x7]
    %v76 = vld [vmem:[%s6] sm:$0x1]
    %v77 = vld [vmem:[#allocation2] sm:$0xff]
    %v78 = vld [vmem:[#allocation2 + $0x8] sm:$0xff]
    %v79 = vld [vmem:[#allocation2 + $0x10] sm:$0xff]
    %v80 = vld [vmem:[#allocation2 + $0x18] sm:$0xff]
    %v81 = vld [vmem:[#allocation2 + $0x20] sm:$0xff]
    %v82 = vld [vmem:[#allocation2 + $0x28] sm:$0xff]
    %v83 = vld [vmem:[#allocation2 + $0x30] sm:$0xff]
    %v84 = vld [vmem:[#allocation2 + $0x38] sm:$0xff]
    %v85 = vld [vmem:[#allocation2 + $0x40] sm:$0xff]
    %v86 = vld [vmem:[#allocation2 + $0x48] sm:$0xff]
    %v87 = vld [vmem:[#allocation2 + $0x50] sm:$0xff]
    %v88 = vld [vmem:[#allocation2 + $0x58] sm:$0xff]
    %v89 = vld [vmem:[#allocation2 + $0x60] sm:$0xff]
    %v90 = vld [vmem:[#allocation2 + $0x68] sm:$0xff]
    %v91 = vld [vmem:[#allocation2 + $0x70] sm:$0xff]
    %v92 = vld [vmem:[#allocation2 + $0x78] sm:$0xff]
    %v93 = vperm.slane %v74, 0
    %94 = vmatpush.msra.mxu0 %v92
    %95 = vmatpush.msra.mxu0 %v91
    %96 = vmatpush.msra.mxu0 %v90
    %97 = vmatpush.msra.mxu0 %v89
    %98 = vmatpush.msra.mxu0 %v88
    %99 = vmatpush.msra.mxu0 %v87
    %100 = vmatpush.msra.mxu0 %v86
    %101 = vmatpush.msra.mxu0 %v85
    %102 = vmatpush.msra.mxu0 %v84
    %103 = vmatpush.msra.mxu0 %v83
    %104 = vmatpush.msra.mxu0 %v82
    %105 = vmatpush.msra.mxu0 %v81
    %106 = vmatpush.msra.mxu0 %v80
    %107 = vmatpush.msra.mxu0 %v79
    %108 = vmatpush.msra.mxu0 %v78
    %109 = vmatpush.msra.mxu0 %v77
    %110 = vmatmul.f32.gmra.mxu0 %v73
    %v111 = vpop.f32.mrf.mxu0
    %v112 = vadd.f32 %v93, %v111
    %113 = vdwg.mxu0
    %114 = vadd.xlane.f32.xlu0 %v112
    %v115 = vpop.xlane.xlu0 %114
    %v116 = vmul.f32 %v115, 0.020833334
    %v117 = vmul.f32 %v112, %v112
    %118 = vadd.xlane.f32.xlu0 %v117
    %v119 = vpop.xlane.xlu0 %118
    %v120 = vmul.f32 %v119, 0.020833334
    %v121 = vmul.f32 %v116, %v116
    %v122 = vsub.f32 %v120, %v121
    %v123 = vsub.f32 %v112, %v116
    %v124 = vadd.f32 %v122, 1e-05
    %v125 = vrsqrt.pop %v124
    %v126 = vmul.f32 %v125, %v124
    %v127 = vmul.f32 %v126, %v125
    %v128 = vmul.f32 0.5, %v127
    %v129 = vsub.f32 1.5, %v128
    %v130 = vmul.f32 %v125, %v129
    %vm131 = vweird.f32 %v124
    %vm132 = vweird.f32 %v125
    %vm133 = vmor %vm131, %vm132
    %v134 = vsel %vm133, %v125, %v130
    %v135 = vmul.f32 %v123, %v134
    %v136 = vperm.slane %v74, 1
    %v137 = vmul.f32 %v135, %v136
    %v138 = vperm.slane %v74, 2
    %v139 = vadd.f32 %v137, %v138
    %v140 = vmax.f32 %v139, 0.0
    %v141 = vld [vmem:[#allocation4] sm:$0xff]
    %v142 = vld [vmem:[#allocation4 + $0x8] sm:$0xff]
    %v143 = vld [vmem:[#allocation4 + $0x10] sm:$0xff]
    %v144 = vld [vmem:[#allocation4 + $0x18] sm:$0xff]
    %v145 = vld [vmem:[#allocation4 + $0x20] sm:$0xff]
    %v146 = vld [vmem:[#allocation4 + $0x28] sm:$0xff]
    %v147 = vld [vmem:[#allocation4 + $0x30] sm:$0xff]
    %v148 = vld [vmem:[#allocation4 + $0x38] sm:$0xff]
    %v149 = vld [vmem:[#allocation4 + $0x40] sm:$0xff]
    %v150 = vld [vmem:[#allocation4 + $0x48] sm:$0xff]
    %v151 = vld [vmem:[#allocation4 + $0x50] sm:$0xff]
    %v152 = vld [vmem:[#allocation4 + $0x58] sm:$0xff]
    %v153 = vld [vmem:[#allocation4 + $0x60] sm:$0xff]
    %v154 = vld [vmem:[#allocation4 + $0x68] sm:$0xff]
    %v155 = vld [vmem:[#allocation4 + $0x70] sm:$0xff]
    %v156 = vld [vmem:[#allocation4 + $0x78] sm:$0xff]
    %v157 = vperm.slane %v75, 0
    %158 = vmatpush.msra.mxu0 %v156
    %159 = vmatpush.msra.mxu0 %v155
    %160 = vmatpush.msra.mxu0 %v154
    %161 = vmatpush.msra.mxu0 %v153
    %162 = vmatpush.msra.mxu0 %v152
    %163 = vmatpush.msra.mxu0 %v151
    %164 = vmatpush.msra.mxu0 %v150
    %165 = vmatpush.msra.mxu0 %v149
    %166 = vmatpush.msra.mxu0 %v148
    %167 = vmatpush.msra.mxu0 %v147
    %168 = vmatpush.msra.mxu0 %v146
    %169 = vmatpush.msra.mxu0 %v145
    %170 = vmatpush.msra.mxu0 %v144
    %171 = vmatpush.msra.mxu0 %v143
    %172 = vmatpush.msra.mxu0 %v142
    %173 = vmatpush.msra.mxu0 %v141
    %174 = vmatmul.f32.gmra.mxu0 %v140
    %v175 = vpop.f32.mrf.mxu0
    %v176 = vadd.f32 %v157, %v175
    %177 = vdwg.mxu0
    %178 = vadd.xlane.f32.xlu0 %v176
    %v179 = vpop.xlane.xlu0 %178
    %v180 = vmul.f32 %v179, 0.015625
    %v181 = vmul.f32 %v176, %v176
    %182 = vadd.xlane.f32.xlu0 %v181
    %v183 = vpop.xlane.xlu0 %182
    %v184 = vmul.f32 %v183, 0.015625
    %v185 = vmul.f32 %v180, %v180
    %v186 = vsub.f32 %v184, %v185
    %v187 = vsub.f32 %v176, %v180
    %v188 = vadd.f32 %v186, 1e-05
    %v189 = vrsqrt.pop %v188
    %v190 = vmul.f32 %v189, %v188
    %v191 = vmul.f32 %v190, %v189
    %v192 = vmul.f32 0.5, %v191
    %v193 = vsub.f32 1.5, %v192
    %v194 = vmul.f32 %v189, %v193
    %vm195 = vweird.f32 %v188
    %vm196 = vweird.f32 %v189
    %vm197 = vmor %vm195, %vm196
    %v198 = vsel %vm197, %v189, %v194
    %v199 = vmul.f32 %v187, %v198
    %v200 = vperm.slane %v75, 1
    %v201 = vmul.f32 %v199, %v200
    %v202 = vperm.slane %v75, 2
    %v203 = vadd.f32 %v201, %v202
    %v204 = vmax.f32 %v203, 0.0
    %v205 = vld [vmem:[#allocation6] sm:$0xff]
    %v206 = vld [vmem:[#allocation6 + $0x8] sm:$0xff]
    %v207 = vld [vmem:[#allocation6 + $0x10] sm:$0xff]
    %v208 = vld [vmem:[#allocation6 + $0x18] sm:$0xff]
    %v209 = vld [vmem:[#allocation6 + $0x20] sm:$0xff]
    %v210 = vld [vmem:[#allocation6 + $0x28] sm:$0xff]
    %v211 = vld [vmem:[#allocation6 + $0x30] sm:$0xff]
    %v212 = vld [vmem:[#allocation6 + $0x38] sm:$0xff]
    %v213 = vld [vmem:[#allocation6 + $0x40] sm:$0xff]
    %v214 = vld [vmem:[#allocation6 + $0x48] sm:$0xff]
    %v215 = vld [vmem:[#allocation6 + $0x50] sm:$0xff]
    %v216 = vld [vmem:[#allocation6 + $0x58] sm:$0xff]
    %v217 = vld [vmem:[#allocation6 + $0x60] sm:$0xff]
    %v218 = vld [vmem:[#allocation6 + $0x68] sm:$0xff]
    %v219 = vld [vmem:[#allocation6 + $0x70] sm:$0xff]
    %v220 = vld [vmem:[#allocation6 + $0x78] sm:$0xff]
    %v222 = vperm.slane %v76, 0
    %224 = vmatpush.msra.mxu0 %v220
    %225 = vmatpush.msra.mxu0 %v219
    %226 = vmatpush.msra.mxu0 %v218
    %227 = vmatpush.msra.mxu0 %v217
    %228 = vmatpush.msra.mxu0 %v216
    %229 = vmatpush.msra.mxu0 %v215
    %230 = vmatpush.msra.mxu0 %v214
    %231 = vmatpush.msra.mxu0 %v213
    %232 = vmatpush.msra.mxu0 %v212
    %233 = vmatpush.msra.mxu0 %v211
    %234 = vmatpush.msra.mxu0 %v210
    %235 = vmatpush.msra.mxu0 %v209
    %236 = vmatpush.msra.mxu0 %v208
    %237 = vmatpush.msra.mxu0 %v207
    %238 = vmatpush.msra.mxu0 %v206
    %239 = vmatpush.msra.mxu0 %v205
    %240 = vmatmul.f32.gmra.mxu0 %v204
    %v241 = vpop.f32.mrf.mxu0
    %v242 = vadd.f32 %v222, %v241
    %243 = vdwg.mxu0
    %v244 = vtanh.pop %v242
    %245 = vst [vmem:[%s7] sm:$0xff] %v244
    // Predicated region
    $region42: #{_fwd.1} parent=1 // pred_check
      _
    $region43: #{_fwd.1} parent=1 // pred_check_branch
      %247 = sbr.rel (0) target = $region45
    $region44: #{_fwd.1} parent=1 // pred_region
      _
    $region45: #{_fwd.1} parent=1 // pred_fallthru
      _
    // Predicated region
    $region46: #{_fwd.1} parent=1 // pred_check
      _
    $region47: #{_fwd.1} parent=1 // pred_check_branch
      %249 = sbr.rel (0) target = $region49
    $region48: #{_fwd.1} parent=1 // pred_region
      _
    $region49: #{_fwd.1} parent=1 // pred_fallthru
      _
    %250 = vsyncpa [#allocation3], 1
    %251 = vsyncpa [#allocation5], 1

</llo_original>
